<compile_context>
chip_gen: v6e
topology: v6e:2x2x1
jax: 0.10.0
libtpu: 0.0.40
codegen_flags: <defaults>
</compile_context>

<pallas_src>
import jax
import jax.numpy as jnp
from jax import lax
from jax.experimental import pallas as pl
from jax.experimental.pallas import tpu as pltpu


def _levdur_kernel(r_ref, out_ref):
    # r_ref / out_ref: (M+1, TILE_R, 128); batch on the (sublane, lane) axes.
    Mp1, tile_r, _ = r_ref.shape
    M = Mp1 - 1
    n_chunks = tile_r // 8

    def chunk(c, carry):
        row = pl.multiple_of(c * 8, 8)
        rows = pl.ds(row, 8)

        # One dense (8, 128) vreg per lag for this batch chunk.
        r = [r_ref[m, rows, :].astype(jnp.float32) for m in range(Mp1)]

        # O(M^2) Levinson recursion, fully unrolled over the static order M.
        # a[i-1] holds coefficient a_i as an (8, 128) vreg.
        E = r[0]                                        # prediction error, starts at r0
        a = []
        for m in range(1, M + 1):
            acc = r[m]
            for i in range(1, m):
                acc = acc + a[i - 1] * r[m - i]
            inv_e = pl.reciprocal(E, approx=True)       # EUP slot (otherwise idle)
            inv_e = inv_e * (2.0 - E * inv_e)           # one NR step -> ~f32-exact 1/E
            k = -acc * inv_e                            # reflection coefficient
            a = [a[i - 1] + k * a[m - i - 1] for i in range(1, m)] + [k]
            E = E * (1.0 - k * k)

        # Gain: K = sqrt(E_M) == sqrt(r0 + r1 . a) in exact arithmetic.
        out_ref[0, rows, :] = jnp.sqrt(E).astype(out_ref.dtype)
        for i in range(1, M + 1):
            out_ref[i, rows, :] = a[i - 1].astype(out_ref.dtype)
        return carry

    lax.fori_loop(0, n_chunks, chunk, 0)


def levinson_durbin(r, lpc_order):
    """Pallas implementation of diffsptk.LevinsonDurbin.forward."""
    *batch, Mp1 = r.shape
    assert Mp1 == lpc_order + 1, "dimension of autocorrelation"

    r2 = r.reshape(-1, Mp1)
    B = r2.shape[0]

    LANES, SUBLANES = 128, 8
    MAX_TILE_R = 512  # ~2.25 MB/block @ M=8 f32 -> ~9 MB double-buffered: safe on v5e/v6e/v7x

    n_rows = -(-B // LANES)                       # batch rows of 128 lanes
    grid = max(1, -(-n_rows // MAX_TILE_R))       # >= 2 tiles for big batches (v7x megacore)
    tile_r = -(-n_rows // grid)                   # balanced rows/tile -> minimal padding
    tile_r = -(-tile_r // SUBLANES) * SUBLANES    # (8, 128) block constraint
    b_pad = grid * tile_r * LANES

    pad = b_pad - B
    if pad:
        # Pad with a "unit" autocorrelation (r0=1, rest 0): padded lanes stay
        # finite (k=0, a=0, K=1) and are sliced off below.
        pad_block = jnp.zeros((pad, Mp1), r2.dtype).at[:, 0].set(1.0)
        r2 = jnp.concatenate([r2, pad_block], axis=0)

    # (M+1, rows, 128): batch fills sublanes AND lanes.  Single XLA transpose
    # each way; the kernel consumes/produces this layout directly.
    rt = r2.reshape(grid * tile_r, LANES, Mp1).transpose(2, 0, 1)

    out_t = pl.pallas_call(
        _levdur_kernel,
        out_shape=jax.ShapeDtypeStruct((Mp1, grid * tile_r, LANES), r.dtype),
        grid=(grid,),
        in_specs=[pl.BlockSpec((Mp1, tile_r, LANES), lambda i: (0, i, 0))],
        out_specs=pl.BlockSpec((Mp1, tile_r, LANES), lambda i: (0, i, 0)),
        compiler_params=pltpu.CompilerParams(
            dimension_semantics=("parallel",)),
    )(rt)

    out = out_t.transpose(1, 2, 0).reshape(b_pad, Mp1)[:B]
    return out.reshape(*batch, Mp1)


if __name__ == "__main__":
    key = jax.random.PRNGKey(0)
    lpc_order = 8
    B0, B1, T = 2, 4, 32

    # Deterministic example input: autocorrelation of a random signal
    # (guarantees a positive-semidefinite Toeplitz matrix).
    x = jax.random.normal(key, (B0, B1, T), dtype=jnp.float32)
    r = jnp.stack(
        [jnp.sum(x[..., : T - k] * x[..., k:], axis=-1) for k in range(lpc_order + 1)],
        axis=-1,
    )  # (2, 4, 9)

    a = jax.block_until_ready(levinson_durbin(r, lpc_order))

    # Pure-JAX reference mirroring the PyTorch code (matrix inversion).
    idx = jnp.abs(jnp.arange(lpc_order)[:, None] - jnp.arange(lpc_order)[None, :])
    R = r[..., :lpc_order][..., idx]
    a_ref = jnp.einsum("...mn,...m->...n", jnp.linalg.inv(R), -r[..., 1:])
    K_ref = jnp.sqrt(jnp.einsum("...m,...m->...", r[..., 1:], a_ref) + r[..., 0])
    ref = jnp.concatenate([K_ref[..., None], a_ref], axis=-1)

    assert a.shape == ref.shape == (B0, B1, lpc_order + 1)
    assert jnp.allclose(a, ref, rtol=1e-3, atol=1e-3), float(jnp.max(jnp.abs(a - ref)))
    print("KERNEL_OK")
</pallas_src>

<mosaic_0001>
module attributes {stable_mosaic.version = 11 : i64} {
  func.func @_levdur_kernel(%arg0: i32, %arg1: memref<9x8x128xf32, #tpu.memory_space<vmem>>, %arg2: memref<9x8x128xf32, #tpu.memory_space<vmem>>) attributes {dimension_semantics = [#tpu.dimension_semantics<parallel>], iteration_bounds = array<i64: 1>, scalar_prefetch = 0 : i64, scratch_operands = 0 : i64, tpu.core_type = #tpu.core_type<tc>, window_params = [{transform_indices = @transform_0, window_bounds = array<i64: 9, 8, 128>}, {transform_indices = @transform_1, window_bounds = array<i64: 9, 8, 128>}]} {
    %c0_i32 = arith.constant 0 : i32
    %c8_i32 = arith.constant 8 : i32
    %0 = arith.muli %c0_i32, %c8_i32 : i32
    %1 = tpu.assume_multiple %0, 8 : i32
    %c0 = arith.constant 0 : index
    %2 = arith.index_cast %1 : i32 to index
    %c0_0 = arith.constant 0 : index
    %3 = vector.load %arg1[%c0, %2, %c0_0] : memref<9x8x128xf32, #tpu.memory_space<vmem>>, vector<1x8x128xf32>
    %4 = vector.shape_cast %3 : vector<1x8x128xf32> to vector<8x128xf32>
    %c1 = arith.constant 1 : index
    %5 = arith.index_cast %1 : i32 to index
    %c0_1 = arith.constant 0 : index
    %6 = vector.load %arg1[%c1, %5, %c0_1] : memref<9x8x128xf32, #tpu.memory_space<vmem>>, vector<1x8x128xf32>
    %7 = vector.shape_cast %6 : vector<1x8x128xf32> to vector<8x128xf32>
    %c2 = arith.constant 2 : index
    %8 = arith.index_cast %1 : i32 to index
    %c0_2 = arith.constant 0 : index
    %9 = vector.load %arg1[%c2, %8, %c0_2] : memref<9x8x128xf32, #tpu.memory_space<vmem>>, vector<1x8x128xf32>
    %10 = vector.shape_cast %9 : vector<1x8x128xf32> to vector<8x128xf32>
    %c3 = arith.constant 3 : index
    %11 = arith.index_cast %1 : i32 to index
    %c0_3 = arith.constant 0 : index
    %12 = vector.load %arg1[%c3, %11, %c0_3] : memref<9x8x128xf32, #tpu.memory_space<vmem>>, vector<1x8x128xf32>
    %13 = vector.shape_cast %12 : vector<1x8x128xf32> to vector<8x128xf32>
    %c4 = arith.constant 4 : index
    %14 = arith.index_cast %1 : i32 to index
    %c0_4 = arith.constant 0 : index
    %15 = vector.load %arg1[%c4, %14, %c0_4] : memref<9x8x128xf32, #tpu.memory_space<vmem>>, vector<1x8x128xf32>
    %16 = vector.shape_cast %15 : vector<1x8x128xf32> to vector<8x128xf32>
    %c5 = arith.constant 5 : index
    %17 = arith.index_cast %1 : i32 to index
    %c0_5 = arith.constant 0 : index
    %18 = vector.load %arg1[%c5, %17, %c0_5] : memref<9x8x128xf32, #tpu.memory_space<vmem>>, vector<1x8x128xf32>
    %19 = vector.shape_cast %18 : vector<1x8x128xf32> to vector<8x128xf32>
    %c6 = arith.constant 6 : index
    %20 = arith.index_cast %1 : i32 to index
    %c0_6 = arith.constant 0 : index
    %21 = vector.load %arg1[%c6, %20, %c0_6] : memref<9x8x128xf32, #tpu.memory_space<vmem>>, vector<1x8x128xf32>
    %22 = vector.shape_cast %21 : vector<1x8x128xf32> to vector<8x128xf32>
    %c7 = arith.constant 7 : index
    %23 = arith.index_cast %1 : i32 to index
    %c0_7 = arith.constant 0 : index
    %24 = vector.load %arg1[%c7, %23, %c0_7] : memref<9x8x128xf32, #tpu.memory_space<vmem>>, vector<1x8x128xf32>
    %25 = vector.shape_cast %24 : vector<1x8x128xf32> to vector<8x128xf32>
    %c8 = arith.constant 8 : index
    %26 = arith.index_cast %1 : i32 to index
    %c0_8 = arith.constant 0 : index
    %27 = vector.load %arg1[%c8, %26, %c0_8] : memref<9x8x128xf32, #tpu.memory_space<vmem>>, vector<1x8x128xf32>
    %28 = vector.shape_cast %27 : vector<1x8x128xf32> to vector<8x128xf32>
    %29 = tpu.reciprocal %4 {approx = true} : vector<8x128xf32> -> vector<8x128xf32>
    %30 = arith.mulf %4, %29 : vector<8x128xf32>
    %cst = arith.constant 2.000000e+00 : f32
    %31 = vector.broadcast %cst : f32 to vector<8x128xf32>
    %32 = arith.subf %31, %30 : vector<8x128xf32>
    %33 = arith.mulf %29, %32 : vector<8x128xf32>
    %cst_9 = arith.constant 0.000000e+00 : f32
    %34 = vector.broadcast %cst_9 : f32 to vector<8x128xf32>
    %35 = arith.subf %34, %7 : vector<8x128xf32>
    %36 = arith.mulf %35, %33 : vector<8x128xf32>
    %37 = arith.mulf %36, %36 : vector<8x128xf32>
    %cst_10 = arith.constant 1.000000e+00 : f32
    %38 = vector.broadcast %cst_10 : f32 to vector<8x128xf32>
    %39 = arith.subf %38, %37 : vector<8x128xf32>
    %40 = arith.mulf %4, %39 : vector<8x128xf32>
    %41 = arith.mulf %36, %7 : vector<8x128xf32>
    %42 = arith.addf %10, %41 : vector<8x128xf32>
    %43 = tpu.reciprocal %40 {approx = true} : vector<8x128xf32> -> vector<8x128xf32>
    %44 = arith.mulf %40, %43 : vector<8x128xf32>
    %cst_11 = arith.constant 2.000000e+00 : f32
    %45 = vector.broadcast %cst_11 : f32 to vector<8x128xf32>
    %46 = arith.subf %45, %44 : vector<8x128xf32>
    %47 = arith.mulf %43, %46 : vector<8x128xf32>
    %cst_12 = arith.constant 0.000000e+00 : f32
    %48 = vector.broadcast %cst_12 : f32 to vector<8x128xf32>
    %49 = arith.subf %48, %42 : vector<8x128xf32>
    %50 = arith.mulf %49, %47 : vector<8x128xf32>
    %51 = arith.mulf %50, %36 : vector<8x128xf32>
    %52 = arith.addf %36, %51 : vector<8x128xf32>
    %53 = arith.mulf %50, %50 : vector<8x128xf32>
    %cst_13 = arith.constant 1.000000e+00 : f32
    %54 = vector.broadcast %cst_13 : f32 to vector<8x128xf32>
    %55 = arith.subf %54, %53 : vector<8x128xf32>
    %56 = arith.mulf %40, %55 : vector<8x128xf32>
    %57 = arith.mulf %52, %10 : vector<8x128xf32>
    %58 = arith.addf %13, %57 : vector<8x128xf32>
    %59 = arith.mulf %50, %7 : vector<8x128xf32>
    %60 = arith.addf %58, %59 : vector<8x128xf32>
    %61 = tpu.reciprocal %56 {approx = true} : vector<8x128xf32> -> vector<8x128xf32>
    %62 = arith.mulf %56, %61 : vector<8x128xf32>
    %cst_14 = arith.constant 2.000000e+00 : f32
    %63 = vector.broadcast %cst_14 : f32 to vector<8x128xf32>
    %64 = arith.subf %63, %62 : vector<8x128xf32>
    %65 = arith.mulf %61, %64 : vector<8x128xf32>
    %cst_15 = arith.constant 0.000000e+00 : f32
    %66 = vector.broadcast %cst_15 : f32 to vector<8x128xf32>
    %67 = arith.subf %66, %60 : vector<8x128xf32>
    %68 = arith.mulf %67, %65 : vector<8x128xf32>
    %69 = arith.mulf %68, %50 : vector<8x128xf32>
    %70 = arith.addf %52, %69 : vector<8x128xf32>
    %71 = arith.mulf %68, %52 : vector<8x128xf32>
    %72 = arith.addf %50, %71 : vector<8x128xf32>
    %73 = arith.mulf %68, %68 : vector<8x128xf32>
    %cst_16 = arith.constant 1.000000e+00 : f32
    %74 = vector.broadcast %cst_16 : f32 to vector<8x128xf32>
    %75 = arith.subf %74, %73 : vector<8x128xf32>
    %76 = arith.mulf %56, %75 : vector<8x128xf32>
    %77 = arith.mulf %70, %13 : vector<8x128xf32>
    %78 = arith.addf %16, %77 : vector<8x128xf32>
    %79 = arith.mulf %72, %10 : vector<8x128xf32>
    %80 = arith.addf %78, %79 : vector<8x128xf32>
    %81 = arith.mulf %68, %7 : vector<8x128xf32>
    %82 = arith.addf %80, %81 : vector<8x128xf32>
    %83 = tpu.reciprocal %76 {approx = true} : vector<8x128xf32> -> vector<8x128xf32>
    %84 = arith.mulf %76, %83 : vector<8x128xf32>
    %cst_17 = arith.constant 2.000000e+00 : f32
    %85 = vector.broadcast %cst_17 : f32 to vector<8x128xf32>
    %86 = arith.subf %85, %84 : vector<8x128xf32>
    %87 = arith.mulf %83, %86 : vector<8x128xf32>
    %cst_18 = arith.constant 0.000000e+00 : f32
    %88 = vector.broadcast %cst_18 : f32 to vector<8x128xf32>
    %89 = arith.subf %88, %82 : vector<8x128xf32>
    %90 = arith.mulf %89, %87 : vector<8x128xf32>
    %91 = arith.mulf %90, %68 : vector<8x128xf32>
    %92 = arith.addf %70, %91 : vector<8x128xf32>
    %93 = arith.mulf %90, %72 : vector<8x128xf32>
    %94 = arith.addf %72, %93 : vector<8x128xf32>
    %95 = arith.mulf %90, %70 : vector<8x128xf32>
    %96 = arith.addf %68, %95 : vector<8x128xf32>
    %97 = arith.mulf %90, %90 : vector<8x128xf32>
    %cst_19 = arith.constant 1.000000e+00 : f32
    %98 = vector.broadcast %cst_19 : f32 to vector<8x128xf32>
    %99 = arith.subf %98, %97 : vector<8x128xf32>
    %100 = arith.mulf %76, %99 : vector<8x128xf32>
    %101 = arith.mulf %92, %16 : vector<8x128xf32>
    %102 = arith.addf %19, %101 : vector<8x128xf32>
    %103 = arith.mulf %94, %13 : vector<8x128xf32>
    %104 = arith.addf %102, %103 : vector<8x128xf32>
    %105 = arith.mulf %96, %10 : vector<8x128xf32>
    %106 = arith.addf %104, %105 : vector<8x128xf32>
    %107 = arith.mulf %90, %7 : vector<8x128xf32>
    %108 = arith.addf %106, %107 : vector<8x128xf32>
    %109 = tpu.reciprocal %100 {approx = true} : vector<8x128xf32> -> vector<8x128xf32>
    %110 = arith.mulf %100, %109 : vector<8x128xf32>
    %cst_20 = arith.constant 2.000000e+00 : f32
    %111 = vector.broadcast %cst_20 : f32 to vector<8x128xf32>
    %112 = arith.subf %111, %110 : vector<8x128xf32>
    %113 = arith.mulf %109, %112 : vector<8x128xf32>
    %cst_21 = arith.constant 0.000000e+00 : f32
    %114 = vector.broadcast %cst_21 : f32 to vector<8x128xf32>
    %115 = arith.subf %114, %108 : vector<8x128xf32>
    %116 = arith.mulf %115, %113 : vector<8x128xf32>
    %117 = arith.mulf %116, %90 : vector<8x128xf32>
    %118 = arith.addf %92, %117 : vector<8x128xf32>
    %119 = arith.mulf %116, %96 : vector<8x128xf32>
    %120 = arith.addf %94, %119 : vector<8x128xf32>
    %121 = arith.mulf %116, %94 : vector<8x128xf32>
    %122 = arith.addf %96, %121 : vector<8x128xf32>
    %123 = arith.mulf %116, %92 : vector<8x128xf32>
    %124 = arith.addf %90, %123 : vector<8x128xf32>
    %125 = arith.mulf %116, %116 : vector<8x128xf32>
    %cst_22 = arith.constant 1.000000e+00 : f32
    %126 = vector.broadcast %cst_22 : f32 to vector<8x128xf32>
    %127 = arith.subf %126, %125 : vector<8x128xf32>
    %128 = arith.mulf %100, %127 : vector<8x128xf32>
    %129 = arith.mulf %118, %19 : vector<8x128xf32>
    %130 = arith.addf %22, %129 : vector<8x128xf32>
    %131 = arith.mulf %120, %16 : vector<8x128xf32>
    %132 = arith.addf %130, %131 : vector<8x128xf32>
    %133 = arith.mulf %122, %13 : vector<8x128xf32>
    %134 = arith.addf %132, %133 : vector<8x128xf32>
    %135 = arith.mulf %124, %10 : vector<8x128xf32>
    %136 = arith.addf %134, %135 : vector<8x128xf32>
    %137 = arith.mulf %116, %7 : vector<8x128xf32>
    %138 = arith.addf %136, %137 : vector<8x128xf32>
    %139 = tpu.reciprocal %128 {approx = true} : vector<8x128xf32> -> vector<8x128xf32>
    %140 = arith.mulf %128, %139 : vector<8x128xf32>
    %cst_23 = arith.constant 2.000000e+00 : f32
    %141 = vector.broadcast %cst_23 : f32 to vector<8x128xf32>
    %142 = arith.subf %141, %140 : vector<8x128xf32>
    %143 = arith.mulf %139, %142 : vector<8x128xf32>
    %cst_24 = arith.constant 0.000000e+00 : f32
    %144 = vector.broadcast %cst_24 : f32 to vector<8x128xf32>
    %145 = arith.subf %144, %138 : vector<8x128xf32>
    %146 = arith.mulf %145, %143 : vector<8x128xf32>
    %147 = arith.mulf %146, %116 : vector<8x128xf32>
    %148 = arith.addf %118, %147 : vector<8x128xf32>
    %149 = arith.mulf %146, %124 : vector<8x128xf32>
    %150 = arith.addf %120, %149 : vector<8x128xf32>
    %151 = arith.mulf %146, %122 : vector<8x128xf32>
    %152 = arith.addf %122, %151 : vector<8x128xf32>
    %153 = arith.mulf %146, %120 : vector<8x128xf32>
    %154 = arith.addf %124, %153 : vector<8x128xf32>
    %155 = arith.mulf %146, %118 : vector<8x128xf32>
    %156 = arith.addf %116, %155 : vector<8x128xf32>
    %157 = arith.mulf %146, %146 : vector<8x128xf32>
    %cst_25 = arith.constant 1.000000e+00 : f32
    %158 = vector.broadcast %cst_25 : f32 to vector<8x128xf32>
    %159 = arith.subf %158, %157 : vector<8x128xf32>
    %160 = arith.mulf %128, %159 : vector<8x128xf32>
    %161 = arith.mulf %148, %22 : vector<8x128xf32>
    %162 = arith.addf %25, %161 : vector<8x128xf32>
    %163 = arith.mulf %150, %19 : vector<8x128xf32>
    %164 = arith.addf %162, %163 : vector<8x128xf32>
    %165 = arith.mulf %152, %16 : vector<8x128xf32>
    %166 = arith.addf %164, %165 : vector<8x128xf32>
    %167 = arith.mulf %154, %13 : vector<8x128xf32>
    %168 = arith.addf %166, %167 : vector<8x128xf32>
    %169 = arith.mulf %156, %10 : vector<8x128xf32>
    %170 = arith.addf %168, %169 : vector<8x128xf32>
    %171 = arith.mulf %146, %7 : vector<8x128xf32>
    %172 = arith.addf %170, %171 : vector<8x128xf32>
    %173 = tpu.reciprocal %160 {approx = true} : vector<8x128xf32> -> vector<8x128xf32>
    %174 = arith.mulf %160, %173 : vector<8x128xf32>
    %cst_26 = arith.constant 2.000000e+00 : f32
    %175 = vector.broadcast %cst_26 : f32 to vector<8x128xf32>
    %176 = arith.subf %175, %174 : vector<8x128xf32>
    %177 = arith.mulf %173, %176 : vector<8x128xf32>
    %cst_27 = arith.constant 0.000000e+00 : f32
    %178 = vector.broadcast %cst_27 : f32 to vector<8x128xf32>
    %179 = arith.subf %178, %172 : vector<8x128xf32>
    %180 = arith.mulf %179, %177 : vector<8x128xf32>
    %181 = arith.mulf %180, %146 : vector<8x128xf32>
    %182 = arith.addf %148, %181 : vector<8x128xf32>
    %183 = arith.mulf %180, %156 : vector<8x128xf32>
    %184 = arith.addf %150, %183 : vector<8x128xf32>
    %185 = arith.mulf %180, %154 : vector<8x128xf32>
    %186 = arith.addf %152, %185 : vector<8x128xf32>
    %187 = arith.mulf %180, %152 : vector<8x128xf32>
    %188 = arith.addf %154, %187 : vector<8x128xf32>
    %189 = arith.mulf %180, %150 : vector<8x128xf32>
    %190 = arith.addf %156, %189 : vector<8x128xf32>
    %191 = arith.mulf %180, %148 : vector<8x128xf32>
    %192 = arith.addf %146, %191 : vector<8x128xf32>
    %193 = arith.mulf %180, %180 : vector<8x128xf32>
    %cst_28 = arith.constant 1.000000e+00 : f32
    %194 = vector.broadcast %cst_28 : f32 to vector<8x128xf32>
    %195 = arith.subf %194, %193 : vector<8x128xf32>
    %196 = arith.mulf %160, %195 : vector<8x128xf32>
    %197 = arith.mulf %182, %25 : vector<8x128xf32>
    %198 = arith.addf %28, %197 : vector<8x128xf32>
    %199 = arith.mulf %184, %22 : vector<8x128xf32>
    %200 = arith.addf %198, %199 : vector<8x128xf32>
    %201 = arith.mulf %186, %19 : vector<8x128xf32>
    %202 = arith.addf %200, %201 : vector<8x128xf32>
    %203 = arith.mulf %188, %16 : vector<8x128xf32>
    %204 = arith.addf %202, %203 : vector<8x128xf32>
    %205 = arith.mulf %190, %13 : vector<8x128xf32>
    %206 = arith.addf %204, %205 : vector<8x128xf32>
    %207 = arith.mulf %192, %10 : vector<8x128xf32>
    %208 = arith.addf %206, %207 : vector<8x128xf32>
    %209 = arith.mulf %180, %7 : vector<8x128xf32>
    %210 = arith.addf %208, %209 : vector<8x128xf32>
    %211 = tpu.reciprocal %196 {approx = true} : vector<8x128xf32> -> vector<8x128xf32>
    %212 = arith.mulf %196, %211 : vector<8x128xf32>
    %cst_29 = arith.constant 2.000000e+00 : f32
    %213 = vector.broadcast %cst_29 : f32 to vector<8x128xf32>
    %214 = arith.subf %213, %212 : vector<8x128xf32>
    %215 = arith.mulf %211, %214 : vector<8x128xf32>
    %cst_30 = arith.constant 0.000000e+00 : f32
    %216 = vector.broadcast %cst_30 : f32 to vector<8x128xf32>
    %217 = arith.subf %216, %210 : vector<8x128xf32>
    %218 = arith.mulf %217, %215 : vector<8x128xf32>
    %219 = arith.mulf %218, %180 : vector<8x128xf32>
    %220 = arith.addf %182, %219 : vector<8x128xf32>
    %221 = arith.mulf %218, %192 : vector<8x128xf32>
    %222 = arith.addf %184, %221 : vector<8x128xf32>
    %223 = arith.mulf %218, %190 : vector<8x128xf32>
    %224 = arith.addf %186, %223 : vector<8x128xf32>
    %225 = arith.mulf %218, %188 : vector<8x128xf32>
    %226 = arith.addf %188, %225 : vector<8x128xf32>
    %227 = arith.mulf %218, %186 : vector<8x128xf32>
    %228 = arith.addf %190, %227 : vector<8x128xf32>
    %229 = arith.mulf %218, %184 : vector<8x128xf32>
    %230 = arith.addf %192, %229 : vector<8x128xf32>
    %231 = arith.mulf %218, %182 : vector<8x128xf32>
    %232 = arith.addf %180, %231 : vector<8x128xf32>
    %233 = arith.mulf %218, %218 : vector<8x128xf32>
    %cst_31 = arith.constant 1.000000e+00 : f32
    %234 = vector.broadcast %cst_31 : f32 to vector<8x128xf32>
    %235 = arith.subf %234, %233 : vector<8x128xf32>
    %236 = arith.mulf %196, %235 : vector<8x128xf32>
    %237 = math.sqrt %236 : vector<8x128xf32>
    %c0_32 = arith.constant 0 : index
    %238 = arith.index_cast %1 : i32 to index
    %c0_33 = arith.constant 0 : index
    %239 = vector.load %arg2[%c0_32, %238, %c0_33] : memref<9x8x128xf32, #tpu.memory_space<vmem>>, vector<1x8x128xf32>
    %240 = vector.shape_cast %239 : vector<1x8x128xf32> to vector<8x128xf32>
    %241 = vector.shape_cast %237 : vector<8x128xf32> to vector<1x8x128xf32>
    tpu.vector_store %arg2[%c0_32, %238, %c0_33], %241 {strides = array<i32>} : memref<9x8x128xf32, #tpu.memory_space<vmem>>, vector<1x8x128xf32>,
    %c1_34 = arith.constant 1 : index
    %242 = arith.index_cast %1 : i32 to index
    %c0_35 = arith.constant 0 : index
    %243 = vector.load %arg2[%c1_34, %242, %c0_35] : memref<9x8x128xf32, #tpu.memory_space<vmem>>, vector<1x8x128xf32>
    %244 = vector.shape_cast %243 : vector<1x8x128xf32> to vector<8x128xf32>
    %245 = vector.shape_cast %220 : vector<8x128xf32> to vector<1x8x128xf32>
    tpu.vector_store %arg2[%c1_34, %242, %c0_35], %245 {strides = array<i32>} : memref<9x8x128xf32, #tpu.memory_space<vmem>>, vector<1x8x128xf32>,
    %c2_36 = arith.constant 2 : index
    %246 = arith.index_cast %1 : i32 to index
    %c0_37 = arith.constant 0 : index
    %247 = vector.load %arg2[%c2_36, %246, %c0_37] : memref<9x8x128xf32, #tpu.memory_space<vmem>>, vector<1x8x128xf32>
    %248 = vector.shape_cast %247 : vector<1x8x128xf32> to vector<8x128xf32>
    %249 = vector.shape_cast %222 : vector<8x128xf32> to vector<1x8x128xf32>
    tpu.vector_store %arg2[%c2_36, %246, %c0_37], %249 {strides = array<i32>} : memref<9x8x128xf32, #tpu.memory_space<vmem>>, vector<1x8x128xf32>,
    %c3_38 = arith.constant 3 : index
    %250 = arith.index_cast %1 : i32 to index
    %c0_39 = arith.constant 0 : index
    %251 = vector.load %arg2[%c3_38, %250, %c0_39] : memref<9x8x128xf32, #tpu.memory_space<vmem>>, vector<1x8x128xf32>
    %252 = vector.shape_cast %251 : vector<1x8x128xf32> to vector<8x128xf32>
    %253 = vector.shape_cast %224 : vector<8x128xf32> to vector<1x8x128xf32>
    tpu.vector_store %arg2[%c3_38, %250, %c0_39], %253 {strides = array<i32>} : memref<9x8x128xf32, #tpu.memory_space<vmem>>, vector<1x8x128xf32>,
    %c4_40 = arith.constant 4 : index
    %254 = arith.index_cast %1 : i32 to index
    %c0_41 = arith.constant 0 : index
    %255 = vector.load %arg2[%c4_40, %254, %c0_41] : memref<9x8x128xf32, #tpu.memory_space<vmem>>, vector<1x8x128xf32>
    %256 = vector.shape_cast %255 : vector<1x8x128xf32> to vector<8x128xf32>
    %257 = vector.shape_cast %226 : vector<8x128xf32> to vector<1x8x128xf32>
    tpu.vector_store %arg2[%c4_40, %254, %c0_41], %257 {strides = array<i32>} : memref<9x8x128xf32, #tpu.memory_space<vmem>>, vector<1x8x128xf32>,
    %c5_42 = arith.constant 5 : index
    %258 = arith.index_cast %1 : i32 to index
    %c0_43 = arith.constant 0 : index
    %259 = vector.load %arg2[%c5_42, %258, %c0_43] : memref<9x8x128xf32, #tpu.memory_space<vmem>>, vector<1x8x128xf32>
    %260 = vector.shape_cast %259 : vector<1x8x128xf32> to vector<8x128xf32>
    %261 = vector.shape_cast %228 : vector<8x128xf32> to vector<1x8x128xf32>
    tpu.vector_store %arg2[%c5_42, %258, %c0_43], %261 {strides = array<i32>} : memref<9x8x128xf32, #tpu.memory_space<vmem>>, vector<1x8x128xf32>,
    %c6_44 = arith.constant 6 : index
    %262 = arith.index_cast %1 : i32 to index
    %c0_45 = arith.constant 0 : index
    %263 = vector.load %arg2[%c6_44, %262, %c0_45] : memref<9x8x128xf32, #tpu.memory_space<vmem>>, vector<1x8x128xf32>
    %264 = vector.shape_cast %263 : vector<1x8x128xf32> to vector<8x128xf32>
    %265 = vector.shape_cast %230 : vector<8x128xf32> to vector<1x8x128xf32>
    tpu.vector_store %arg2[%c6_44, %262, %c0_45], %265 {strides = array<i32>} : memref<9x8x128xf32, #tpu.memory_space<vmem>>, vector<1x8x128xf32>,
    %c7_46 = arith.constant 7 : index
    %266 = arith.index_cast %1 : i32 to index
    %c0_47 = arith.constant 0 : index
    %267 = vector.load %arg2[%c7_46, %266, %c0_47] : memref<9x8x128xf32, #tpu.memory_space<vmem>>, vector<1x8x128xf32>
    %268 = vector.shape_cast %267 : vector<1x8x128xf32> to vector<8x128xf32>
    %269 = vector.shape_cast %232 : vector<8x128xf32> to vector<1x8x128xf32>
    tpu.vector_store %arg2[%c7_46, %266, %c0_47], %269 {strides = array<i32>} : memref<9x8x128xf32, #tpu.memory_space<vmem>>, vector<1x8x128xf32>,
    %c8_48 = arith.constant 8 : index
    %270 = arith.index_cast %1 : i32 to index
    %c0_49 = arith.constant 0 : index
    %271 = vector.load %arg2[%c8_48, %270, %c0_49] : memref<9x8x128xf32, #tpu.memory_space<vmem>>, vector<1x8x128xf32>
    %272 = vector.shape_cast %271 : vector<1x8x128xf32> to vector<8x128xf32>
    %273 = vector.shape_cast %218 : vector<8x128xf32> to vector<1x8x128xf32>
    tpu.vector_store %arg2[%c8_48, %270, %c0_49], %273 {strides = array<i32>} : memref<9x8x128xf32, #tpu.memory_space<vmem>>, vector<1x8x128xf32>,
    %c1_i32 = arith.constant 1 : i32
    return
  }
  func.func @transform_0(%arg0: i32) -> (i32, i32, i32) {
    %c0_i32 = arith.constant 0 : i32
    %c0_i32_0 = arith.constant 0 : i32
    %c0_i32_1 = arith.constant 0 : i32
    return %c0_i32, %arg0, %c0_i32_0 : i32, i32, i32
  }
  func.func @transform_1(%arg0: i32) -> (i32, i32, i32) {
    %c0_i32 = arith.constant 0 : i32
    %c0_i32_0 = arith.constant 0 : i32
    %c0_i32_1 = arith.constant 0 : i32
    return %c0_i32, %arg0, %c0_i32_0 : i32, i32, i32
  }
}

</mosaic_0001>

<llo_original>
// kernel: tpu_custom_call.1
$region0: #{tpu_custom_call.1}
  #allocation0 [shape = 'u32[]', space=smem, size = 0x4, offset = 0x4, fixed_abs, tag = 'smem constant byte address 0x4 - core index']
  #allocation1 [shape = 'u32[144,128]{1,0:T(1,128)}', space=vmem, size = 0x12000, scoped, tag = 'internal scratch']
  %s0 = inlined_call_operand.hbm [shape: f32[9,8,128], index: 0, kind: input, shape index: {}]
  %s1 = inlined_call_operand.hbm [shape: f32[9,8,128], index: 1, kind: output, shape index: {}]
  %s2 = sld [smem:[#allocation0]]
  $region18: #{tpu_custom_call.1} parent=0
    _
  %s4 = ssub.s32 1, %s2
  %s5 = scalar_select 0, %s4, %s2
  $region1: #{tpu_custom_call.1} parent=0
    #allocation2 [shape = 'u8[36864]{0}', space=vmem, size = 0x9000, scoped, tag = 'input window, operand 0, single buffered']
    #allocation3 [shape = 's32[1]{0}', space=sflag, size = 0x4, scoped, tag = 'scoped memory for tpu_custom_call.1']
    #allocation4 [shape = 's32[1]{0}', space=sflag, size = 0x4, scoped, tag = 'scoped memory for tpu_custom_call.1']
    #allocation5 [shape = 'u8[36864]{0}', space=vmem, size = 0x9000, scoped, tag = 'output window, operand 0, single buffered']
    %6 = vsyncpa [#allocation3], 0
    %7 = vsyncpa [#allocation4], 0
    // Predicated region
    $region2: #{tpu_custom_call.1} parent=1 // pred_check
      _
    $region3: #{tpu_custom_call.1} parent=1 // pred_check_branch
      %9 = sbr.rel (0) target = $region5
    $region4: #{tpu_custom_call.1} parent=1 // pred_region
      %s11 = ssub.s32 1152, 1152
      %12 = vsyncadd [#allocation3], %s11
      %s13 = sshll.u32 [#allocation2], 4
      %s14 = int_to_ptr.vmem [resolvable:$true] %s13
      %19 = dma.hbm_to_vmem [thread:$0]  %s0, 1152, %s14, [#allocation3], 128, 128, 8
    $region5: #{tpu_custom_call.1} parent=1 // pred_fallthru
      _
    // Predicated region
    $region6: #{tpu_custom_call.1} parent=1 // pred_check
      _
    $region7: #{tpu_custom_call.1} parent=1 // pred_check_branch
      %21 = sbr.rel (0) target = $region9
    $region8: #{tpu_custom_call.1} parent=1 // pred_region
      %22 = dma.done [#allocation3], 1152
    $region9: #{tpu_custom_call.1} parent=1 // pred_fallthru
      _
    %v23 = vld [vmem:[#allocation2] sm:$0xff]
    %s24 = sadd.s32 0, 8
    %s25 = scalar_lea.vmem [#allocation2], %s24
    %v26 = vld [vmem:[%s25] sm:$0xff]
    %s27 = sadd.s32 0, 16
    %s28 = scalar_lea.vmem [#allocation2], %s27
    %v29 = vld [vmem:[%s28] sm:$0xff]
    %s30 = sadd.s32 0, 24
    %s31 = scalar_lea.vmem [#allocation2], %s30
    %v32 = vld [vmem:[%s31] sm:$0xff]
    %s33 = sadd.s32 0, 32
    %s34 = scalar_lea.vmem [#allocation2], %s33
    %v35 = vld [vmem:[%s34] sm:$0xff]
    %s36 = sadd.s32 0, 40
    %s37 = scalar_lea.vmem [#allocation2], %s36
    %v38 = vld [vmem:[%s37] sm:$0xff]
    %s39 = sadd.s32 0, 48
    %s40 = scalar_lea.vmem [#allocation2], %s39
    %v41 = vld [vmem:[%s40] sm:$0xff]
    %s42 = sadd.s32 0, 56
    %s43 = scalar_lea.vmem [#allocation2], %s42
    %v44 = vld [vmem:[%s43] sm:$0xff]
    %s45 = sadd.s32 0, 64
    %s46 = scalar_lea.vmem [#allocation2], %s45
    %v47 = vld [vmem:[%s46] sm:$0xff]
    %v48 = vrcp.pop %v23
    %v49 = vmul.f32 %v23, %v48
    %v50 = vsub.f32 2.0, %v49
    %v51 = vmul.f32 %v48, %v50
    %v52 = vsub.f32 0.0, %v26
    %v53 = vmul.f32 %v52, %v51
    %v54 = vmul.f32 %v53, %v53
    %v55 = vsub.f32 1.0, %v54
    %v56 = vmul.f32 %v23, %v55
    %v57 = vmul.f32 %v53, %v26
    %v58 = vadd.f32 %v29, %v57
    %v59 = vrcp.pop %v56
    %v60 = vmul.f32 %v56, %v59
    %v61 = vsub.f32 2.0, %v60
    %v62 = vmul.f32 %v59, %v61
    %v63 = vsub.f32 0.0, %v58
    %v64 = vmul.f32 %v63, %v62
    %v65 = vmul.f32 %v64, %v53
    %v66 = vadd.f32 %v53, %v65
    %v67 = vmul.f32 %v64, %v64
    %v68 = vsub.f32 1.0, %v67
    %v69 = vmul.f32 %v56, %v68
    %v70 = vmul.f32 %v66, %v29
    %v71 = vadd.f32 %v32, %v70
    %v72 = vmul.f32 %v64, %v26
    %v73 = vadd.f32 %v71, %v72
    %v74 = vrcp.pop %v69
    %v75 = vmul.f32 %v69, %v74
    %v76 = vsub.f32 2.0, %v75
    %v77 = vmul.f32 %v74, %v76
    %v78 = vsub.f32 0.0, %v73
    %v79 = vmul.f32 %v78, %v77
    %v80 = vmul.f32 %v79, %v64
    %v81 = vadd.f32 %v66, %v80
    %v82 = vmul.f32 %v79, %v66
    %v83 = vadd.f32 %v64, %v82
    %v84 = vmul.f32 %v79, %v79
    %v85 = vsub.f32 1.0, %v84
    %v86 = vmul.f32 %v69, %v85
    %v87 = vmul.f32 %v81, %v32
    %v88 = vadd.f32 %v35, %v87
    %v89 = vmul.f32 %v83, %v29
    %v90 = vadd.f32 %v88, %v89
    %v91 = vmul.f32 %v79, %v26
    %v92 = vadd.f32 %v90, %v91
    %v93 = vrcp.pop %v86
    %v94 = vmul.f32 %v86, %v93
    %v95 = vsub.f32 2.0, %v94
    %v96 = vmul.f32 %v93, %v95
    %v97 = vsub.f32 0.0, %v92
    %v98 = vmul.f32 %v97, %v96
    %v99 = vmul.f32 %v98, %v79
    %v100 = vadd.f32 %v81, %v99
    %v101 = vmul.f32 %v98, %v83
    %v102 = vadd.f32 %v83, %v101
    %v103 = vmul.f32 %v98, %v81
    %v104 = vadd.f32 %v79, %v103
    %v105 = vmul.f32 %v98, %v98
    %v106 = vsub.f32 1.0, %v105
    %v107 = vmul.f32 %v86, %v106
    %v108 = vmul.f32 %v100, %v35
    %v109 = vadd.f32 %v38, %v108
    %v110 = vmul.f32 %v102, %v32
    %v111 = vadd.f32 %v109, %v110
    %v112 = vmul.f32 %v104, %v29
    %v113 = vadd.f32 %v111, %v112
    %v114 = vmul.f32 %v98, %v26
    %v115 = vadd.f32 %v113, %v114
    %v116 = vrcp.pop %v107
    %v117 = vmul.f32 %v107, %v116
    %v118 = vsub.f32 2.0, %v117
    %v119 = vmul.f32 %v116, %v118
    %v120 = vsub.f32 0.0, %v115
    %v121 = vmul.f32 %v120, %v119
    %v122 = vmul.f32 %v121, %v98
    %v123 = vadd.f32 %v100, %v122
    %v124 = vmul.f32 %v121, %v104
    %v125 = vadd.f32 %v102, %v124
    %v126 = vmul.f32 %v121, %v102
    %v127 = vadd.f32 %v104, %v126
    %v128 = vmul.f32 %v121, %v100
    %v129 = vadd.f32 %v98, %v128
    %v130 = vmul.f32 %v121, %v121
    %v131 = vsub.f32 1.0, %v130
    %v132 = vmul.f32 %v107, %v131
    %v133 = vmul.f32 %v123, %v38
    %v134 = vadd.f32 %v41, %v133
    %v135 = vmul.f32 %v125, %v35
    %v136 = vadd.f32 %v134, %v135
    %v137 = vmul.f32 %v127, %v32
    %v138 = vadd.f32 %v136, %v137
    %v139 = vmul.f32 %v129, %v29
    %v140 = vadd.f32 %v138, %v139
    %v141 = vmul.f32 %v121, %v26
    %v142 = vadd.f32 %v140, %v141
    %v143 = vrcp.pop %v132
    %v144 = vmul.f32 %v132, %v143
    %v145 = vsub.f32 2.0, %v144
    %v146 = vmul.f32 %v143, %v145
    %v147 = vsub.f32 0.0, %v142
    %v148 = vmul.f32 %v147, %v146
    %v149 = vmul.f32 %v148, %v121
    %v150 = vadd.f32 %v123, %v149
    %v151 = vmul.f32 %v148, %v129
    %v152 = vadd.f32 %v125, %v151
    %v153 = vmul.f32 %v148, %v127
    %v154 = vadd.f32 %v127, %v153
    %v155 = vmul.f32 %v148, %v125
    %v156 = vadd.f32 %v129, %v155
    %v157 = vmul.f32 %v148, %v123
    %v158 = vadd.f32 %v121, %v157
    %v159 = vmul.f32 %v148, %v148
    %v160 = vsub.f32 1.0, %v159
    %v161 = vmul.f32 %v132, %v160
    %v162 = vmul.f32 %v150, %v41
    %v163 = vadd.f32 %v44, %v162
    %v164 = vmul.f32 %v152, %v38
    %v165 = vadd.f32 %v163, %v164
    %v166 = vmul.f32 %v154, %v35
    %v167 = vadd.f32 %v165, %v166
    %v168 = vmul.f32 %v156, %v32
    %v169 = vadd.f32 %v167, %v168
    %v170 = vmul.f32 %v158, %v29
    %v171 = vadd.f32 %v169, %v170
    %v172 = vmul.f32 %v148, %v26
    %v173 = vadd.f32 %v171, %v172
    %v174 = vrcp.pop %v161
    %v175 = vmul.f32 %v161, %v174
    %v176 = vsub.f32 2.0, %v175
    %v177 = vmul.f32 %v174, %v176
    %v178 = vsub.f32 0.0, %v173
    %v179 = vmul.f32 %v178, %v177
    %v180 = vmul.f32 %v179, %v148
    %v181 = vadd.f32 %v150, %v180
    %v182 = vmul.f32 %v179, %v158
    %v183 = vadd.f32 %v152, %v182
    %v184 = vmul.f32 %v179, %v156
    %v185 = vadd.f32 %v154, %v184
    %v186 = vmul.f32 %v179, %v154
    %v187 = vadd.f32 %v156, %v186
    %v188 = vmul.f32 %v179, %v152
    %v189 = vadd.f32 %v158, %v188
    %v190 = vmul.f32 %v179, %v150
    %v191 = vadd.f32 %v148, %v190
    %v192 = vmul.f32 %v179, %v179
    %v193 = vsub.f32 1.0, %v192
    %v194 = vmul.f32 %v161, %v193
    %v195 = vmul.f32 %v181, %v44
    %v196 = vadd.f32 %v47, %v195
    %v197 = vmul.f32 %v183, %v41
    %v198 = vadd.f32 %v196, %v197
    %v199 = vmul.f32 %v185, %v38
    %v200 = vadd.f32 %v198, %v199
    %v201 = vmul.f32 %v187, %v35
    %v202 = vadd.f32 %v200, %v201
    %v203 = vmul.f32 %v189, %v32
    %v204 = vadd.f32 %v202, %v203
    %v205 = vmul.f32 %v191, %v29
    %v206 = vadd.f32 %v204, %v205
    %v207 = vmul.f32 %v179, %v26
    %v208 = vadd.f32 %v206, %v207
    %v209 = vrcp.pop %v194
    %v210 = vmul.f32 %v194, %v209
    %v211 = vsub.f32 2.0, %v210
    %v212 = vmul.f32 %v209, %v211
    %v213 = vsub.f32 0.0, %v208
    %v214 = vmul.f32 %v213, %v212
    %v215 = vmul.f32 %v214, %v179
    %v216 = vadd.f32 %v181, %v215
    %v217 = vmul.f32 %v214, %v191
    %v218 = vadd.f32 %v183, %v217
    %v219 = vmul.f32 %v214, %v189
    %v220 = vadd.f32 %v185, %v219
    %v221 = vmul.f32 %v214, %v187
    %v222 = vadd.f32 %v187, %v221
    %v223 = vmul.f32 %v214, %v185
    %v224 = vadd.f32 %v189, %v223
    %v225 = vmul.f32 %v214, %v183
    %v226 = vadd.f32 %v191, %v225
    %v227 = vmul.f32 %v214, %v181
    %v228 = vadd.f32 %v179, %v227
    %v229 = vmul.f32 %v214, %v214
    %v230 = vsub.f32 1.0, %v229
    %v231 = vmul.f32 %v194, %v230
    %v232 = vrsqrt.pop %v231
    %v233 = vmul.f32 %v231, %v232
    %vm234 = vcmp.eq.f32.partialorder %v231, inf
    %v235 = vsel %vm234, %v231, %v233
    %vm236 = vcmp.eq.f32.partialorder %v231, 0.0
    %v237 = vand.u32 %v231, 2147483648
    %v238 = vsel %vm236, %v237, %v235
    %239 = vst [vmem:[#allocation5] sm:$0xff] %v238
    %s240 = scalar_lea.vmem [#allocation5], %s24
    %241 = vst [vmem:[%s240] sm:$0xff] %v216
    %s242 = scalar_lea.vmem [#allocation5], %s27
    %243 = vst [vmem:[%s242] sm:$0xff] %v218
    %s244 = scalar_lea.vmem [#allocation5], %s30
    %245 = vst [vmem:[%s244] sm:$0xff] %v220
    %s246 = scalar_lea.vmem [#allocation5], %s33
    %247 = vst [vmem:[%s246] sm:$0xff] %v222
    %s248 = scalar_lea.vmem [#allocation5], %s36
    %249 = vst [vmem:[%s248] sm:$0xff] %v224
    %s250 = scalar_lea.vmem [#allocation5], %s39
    %251 = vst [vmem:[%s250] sm:$0xff] %v226
    %s252 = scalar_lea.vmem [#allocation5], %s42
    %253 = vst [vmem:[%s252] sm:$0xff] %v228
    %s254 = scalar_lea.vmem [#allocation5], %s45
    %255 = vst [vmem:[%s254] sm:$0xff] %v214
    // Predicated region
    $region10: #{tpu_custom_call.1} parent=1 // pred_check
      _
    $region11: #{tpu_custom_call.1} parent=1 // pred_check_branch
      %257 = sbr.rel (0) target = $region13
    $region12: #{tpu_custom_call.1} parent=1 // pred_region
      %s259 = ssub.s32 1152, 1152
      %260 = vsyncadd [#allocation4], %s259
      %s261 = sshll.u32 [#allocation5], 4
      %s262 = int_to_ptr.vmem [resolvable:$true] %s261
      %267 = dma.vmem_to_hbm [thread:$0]  %s262, 1152, %s1, [#allocation4], 128, 128, 8
    $region13: #{tpu_custom_call.1} parent=1 // pred_fallthru
      _
    // Predicated region
    $region14: #{tpu_custom_call.1} parent=1 // pred_check
      _
    $region15: #{tpu_custom_call.1} parent=1 // pred_check_branch
      %269 = sbr.rel (0) target = $region17
    $region16: #{tpu_custom_call.1} parent=1 // pred_region
      %270 = dma.done [#allocation4], 1152
    $region17: #{tpu_custom_call.1} parent=1 // pred_fallthru
      _
    %271 = vsyncpa [#allocation3], 1
    %272 = vsyncpa [#allocation4], 1

</llo_original>
